<compile_context>
chip_gen: v7x
topology: tpu7x:2x2x1
jax: 0.10.0
libtpu: 0.0.40
codegen_flags: <defaults>
</compile_context>

<pallas_src>
import functools

import jax
import jax.numpy as jnp
from jax.experimental import pallas as pl
from jax.experimental.pallas import tpu as pltpu


def _attention_kernel(scale_ref, q_ref, k_ref, v_ref, ctx_ref, w_ref,
                      m_sc, l_sc, acc_sc, ms_sc, *, n_k, block_k):
    ki = pl.program_id(2)

    @pl.when(ki == 0)
    def _init():
        m_sc[...] = jnp.full(m_sc.shape, -jnp.inf, dtype=m_sc.dtype)
        l_sc[...] = jnp.zeros(l_sc.shape, dtype=l_sc.dtype)
        acc_sc[...] = jnp.zeros(acc_sc.shape, dtype=acc_sc.dtype)

    scale = scale_ref[0]
    q = q_ref[...]
    k = k_ref[...]
    v = v_ref[...]

    if q.dtype == jnp.float32:
        # Fold scale into q: a (bb, tq, H) VPU multiply instead of (tq, tk).
        q = q * scale
        s = jnp.einsum("bqh,bkh->bqk", q, k,
                       preferred_element_type=jnp.float32)     # (bb, tq, tk)
    else:
        # Keep narrow MXU operands (bf16 rate); accumulate f32, scale scores.
        s = jnp.einsum("bqh,bkh->bqk", q, k,
                       preferred_element_type=jnp.float32) * scale

    m_prev = m_sc[...]
    m_new = jnp.maximum(m_prev, jnp.max(s, axis=-1, keepdims=True))
    alpha = jnp.exp(m_prev - m_new)
    p = jnp.exp(s - m_new)                                      # f32

    if n_k > 1:
        # Stash the exponentiated tile + the running max it used; finalize
        # then only needs a per-slab VPU rescale (no second exp pass).
        off = pl.multiple_of(ki * block_k, block_k)
        w_ref[:, :, pl.ds(off, block_k)] = p.astype(w_ref.dtype)
        ms_sc[ki] = m_new

    l_sc[...] = alpha * l_sc[...] + jnp.sum(p, axis=-1, keepdims=True)
    # Keep full f32 probabilities for the PV matmul when inputs are f32;
    # use the bf16 MXU rate otherwise.
    pv = p if v.dtype == jnp.float32 else p.astype(v.dtype)
    acc_sc[...] = alpha * acc_sc[...] + jnp.einsum(
        "bqk,bkh->bqh", pv, v, preferred_element_type=jnp.float32)
    m_sc[...] = m_new

    @pl.when(ki == n_k - 1)
    def _finalize():
        inv_l = pl.reciprocal(l_sc[...], approx=False)          # exact
        ctx_ref[...] = (acc_sc[...] * inv_l).astype(ctx_ref.dtype)
        if n_k == 1:
            # Single k tile: p is still in registers -- write weights once.
            w_ref[...] = (p * inv_l).astype(w_ref.dtype)
        else:
            m_fin = m_sc[...]
            for j in range(n_k):
                corr = jnp.exp(ms_sc[j] - m_fin) * inv_l        # (bb, tq, 1)
                lo = j * block_k
                slab = w_ref[:, :, lo:lo + block_k].astype(jnp.float32)
                w_ref[:, :, lo:lo + block_k] = (slab * corr).astype(w_ref.dtype)


def _round_up(x, m):
    return -(-x // m) * m


def _vmem_capacity_bytes():
    try:
        info = pltpu.get_tpu_info()
        cap = getattr(info, "vmem_capacity_bytes", None)
        if cap:
            return int(cap)
    except Exception:
        pass
    return 64 << 20   # conservative default: v7x per-TensorCore VMEM


def attention_forward(query, key, value, scale):
    """query/key/value: (B, S, H). scale: (1,) float32.

    Returns (context (B, S, H), attention_weights (B, S, S)), both in the
    input dtype (matching PyTorch softmax/matmul dtype semantics).
    """
    B, S, H = query.shape
    dtype = query.dtype
    isz = jnp.dtype(dtype).itemsize

    vmem_cap = _vmem_capacity_bytes()
    budget = int(vmem_cap * 0.8)   # headroom for compiler internal scratch

    def footprint(bb, tq, tk, n_k):
        lane_h = _round_up(H, 128)
        lane_s = _round_up(S, 128)
        sl_q = _round_up(tq, 8)
        sl_k = _round_up(tk, 8)
        bytes_in = (2 * bb * sl_q * lane_h          # q (double-buffered)
                    + 2 * 2 * bb * sl_k * lane_h) * isz   # k, v
        bytes_out = (2 * bb * sl_q * lane_h * isz         # ctx
                     + 2 * bb * sl_q * lane_s * isz)      # resident weights
        bytes_scr = bb * sl_q * (2 * 128 + lane_h) * 4 + n_k * bb * sl_q * 128 * 4
        return bytes_in + bytes_out + bytes_scr

    def pick(dim, candidates):
        for c in candidates:
            if c <= dim and dim % c == 0:
                return c
        return dim

    # k tile: multiple of 128 when S allows (lane-dense weight slab stores).
    tk = pick(S, (512, 256, 128, 64, 32, 16, 8))
    n_k = S // tk

    # q tile: largest candidate that keeps the resident footprint in budget;
    # 512 only considered on 128-MiB VMEM parts (v5e/v6e).
    tq_cands = (512, 256, 128, 64, 32, 16, 8) if budget > (80 << 20) \
        else (256, 128, 64, 32, 16, 8)
    tq = None
    for c in tq_cands:
        if c <= S and S % c == 0 and footprint(1, c, tk, n_k) <= budget // 2:
            tq = c
            break
    if tq is None:
        tq = pick(S, (8,))
    n_q = S // tq

    # Batch fusion when the k axis collapses, but keep >= 2 parallel grid
    # steps whenever possible (v7x has 2 TensorCores).
    bb = 1
    if n_k == 1 and B > 1:
        for cand in sorted((d for d in range(1, B + 1) if B % d == 0),
                           reverse=True):
            if (B // cand) * n_q < 2:
                continue
            if footprint(cand, tq, tk, n_k) <= budget // 2:
                bb = cand
                break
    n_b = B // bb
    grid = (n_b, n_q, n_k)

    kernel = functools.partial(_attention_kernel, n_k=n_k, block_k=tk)

    q_spec = pl.BlockSpec((bb, tq, H), lambda b, qi, ki: (b, qi, 0))
    kv_spec = pl.BlockSpec((bb, tk, H), lambda b, qi, ki: (b, ki, 0))
    ctx_spec = pl.BlockSpec((bb, tq, H), lambda b, qi, ki: (b, qi, 0))
    w_spec = pl.BlockSpec((bb, tq, S), lambda b, qi, ki: (b, qi, 0))
    scale_spec = pl.BlockSpec(memory_space=pltpu.MemorySpace.SMEM)

    return pl.pallas_call(
        kernel,
        out_shape=(
            jax.ShapeDtypeStruct((B, S, H), dtype),
            jax.ShapeDtypeStruct((B, S, S), dtype),
        ),
        grid_spec=pltpu.PrefetchScalarGridSpec(
            num_scalar_prefetch=0,
            grid=grid,
            in_specs=[scale_spec, q_spec, kv_spec, kv_spec],
            out_specs=(ctx_spec, w_spec),
            scratch_shapes=[
                pltpu.VMEM((bb, tq, 1), jnp.float32),        # running max
                pltpu.VMEM((bb, tq, 1), jnp.float32),        # running denom
                pltpu.VMEM((bb, tq, H), jnp.float32),        # ctx accumulator
                pltpu.VMEM((n_k, bb, tq, 1), jnp.float32),   # per-step max stash
            ],
        ),
        compiler_params=pltpu.CompilerParams(
            dimension_semantics=("parallel", "parallel", "arbitrary"),
            vmem_limit_bytes=int(budget),
        ),
    )(scale, query, key, value)


def reference_forward(query, key, value, scale):
    scores = jnp.einsum("bqh,bkh->bqk", query, key) * scale[0]
    w = jax.nn.softmax(scores, axis=-1)
    ctx = jnp.einsum("bqk,bkh->bqh", w, value)
    return ctx, w


if __name__ == "__main__":
    B, S, H = 2, 8, 32
    root = jax.random.PRNGKey(0)
    kq, kk, kv = jax.random.split(root, 3)

    query = jax.random.normal(kq, (B, S, H), dtype=jnp.float32)
    key = jax.random.normal(kk, (B, S, H), dtype=jnp.float32)
    value = jax.random.normal(kv, (B, S, H), dtype=jnp.float32)
    # scale = Parameter([1/sqrt(hidden_size)]) -- the only parameter used by
    # forward(); the module's q/k/v Linear layers are never applied there.
    scale = jnp.array([1.0 / (H ** 0.5)], dtype=jnp.float32)

    ctx, weights = attention_forward(query, key, value, scale)
    ctx = jax.block_until_ready(ctx)
    weights = jax.block_until_ready(weights)

    ctx_ref, w_ref = reference_forward(query, key, value, scale)
    assert ctx.shape == (B, S, H)
    assert weights.shape == (B, S, S)
    assert jnp.allclose(ctx, ctx_ref, atol=1e-5, rtol=1e-5)
    assert jnp.allclose(weights, w_ref, atol=1e-5, rtol=1e-5)

    print("KERNEL_OK")
</pallas_src>

<mosaic_0001>
module attributes {stable_mosaic.version = 11 : i64} {
  func.func @_attention_kernel(%arg0: i32, %arg1: i32, %arg2: i32, %arg3: memref<1xf32, #tpu.memory_space<smem>>, %arg4: memref<1x8x32xf32, #tpu.memory_space<vmem>>, %arg5: memref<1x8x32xf32, #tpu.memory_space<vmem>>, %arg6: memref<1x8x32xf32, #tpu.memory_space<vmem>>, %arg7: memref<1x8x32xf32, #tpu.memory_space<vmem>>, %arg8: memref<1x8x8xf32, #tpu.memory_space<vmem>>, %arg9: memref<1x8x1xf32, #tpu.memory_space<vmem>>, %arg10: memref<1x8x1xf32, #tpu.memory_space<vmem>>, %arg11: memref<1x8x32xf32, #tpu.memory_space<vmem>>, %arg12: memref<1x1x8x1xf32, #tpu.memory_space<vmem>>) attributes {dimension_semantics = [#tpu.dimension_semantics<parallel>, #tpu.dimension_semantics<parallel>, #tpu.dimension_semantics<arbitrary>], iteration_bounds = array<i64: 2, 1, 1>, scalar_prefetch = 0 : i64, scratch_operands = 4 : i64, tpu.core_type = #tpu.core_type<tc>, window_params = [{transform_indices = @transform_0, window_bounds = array<i64: 1>}, {transform_indices = @transform_1, window_bounds = array<i64: 1, 8, 32>}, {transform_indices = @transform_2, window_bounds = array<i64: 1, 8, 32>}, {transform_indices = @transform_3, window_bounds = array<i64: 1, 8, 32>}, {transform_indices = @transform_4, window_bounds = array<i64: 1, 8, 32>}, {transform_indices = @transform_5, window_bounds = array<i64: 1, 8, 8>}]} {
    %c0_i32 = arith.constant 0 : i32
    %0 = arith.cmpi eq, %arg2, %c0_i32 : i32
    %1 = arith.extui %0 : i1 to i32
    %c0_i32_0 = arith.constant 0 : i32
    %2 = arith.cmpi ne, %1, %c0_i32_0 : i32
    scf.if %2 {
      %cst_33 = arith.constant 0xFF800000 : f32
      %35 = vector.broadcast %cst_33 : f32 to vector<1x8x1xf32>
      %c0_34 = arith.constant 0 : index
      %c0_35 = arith.constant 0 : index
      %c0_36 = arith.constant 0 : index
      %36 = vector.load %arg9[%c0_34, %c0_35, %c0_36] : memref<1x8x1xf32, #tpu.memory_space<vmem>>, vector<1x8x1xf32>
      tpu.vector_store %arg9[%c0_34, %c0_35, %c0_36], %35 {strides = array<i32>} : memref<1x8x1xf32, #tpu.memory_space<vmem>>, vector<1x8x1xf32>,
      %cst_37 = arith.constant 0.000000e+00 : f32
      %37 = vector.broadcast %cst_37 : f32 to vector<1x8x1xf32>
      %c0_38 = arith.constant 0 : index
      %c0_39 = arith.constant 0 : index
      %c0_40 = arith.constant 0 : index
      %38 = vector.load %arg10[%c0_38, %c0_39, %c0_40] : memref<1x8x1xf32, #tpu.memory_space<vmem>>, vector<1x8x1xf32>
      tpu.vector_store %arg10[%c0_38, %c0_39, %c0_40], %37 {strides = array<i32>} : memref<1x8x1xf32, #tpu.memory_space<vmem>>, vector<1x8x1xf32>,
      %cst_41 = arith.constant 0.000000e+00 : f32
      %39 = vector.broadcast %cst_41 : f32 to vector<1x8x32xf32>
      %c0_42 = arith.constant 0 : index
      %c0_43 = arith.constant 0 : index
      %c0_44 = arith.constant 0 : index
      %40 = vector.load %arg11[%c0_42, %c0_43, %c0_44] : memref<1x8x32xf32, #tpu.memory_space<vmem>>, vector<1x8x32xf32>
      tpu.vector_store %arg11[%c0_42, %c0_43, %c0_44], %39 {strides = array<i32>} : memref<1x8x32xf32, #tpu.memory_space<vmem>>, vector<1x8x32xf32>,
    } else {
    }
    %c0 = arith.constant 0 : index
    %3 = memref.load %arg3[%c0] : memref<1xf32, #tpu.memory_space<smem>>
    %c0_1 = arith.constant 0 : index
    %c0_2 = arith.constant 0 : index
    %c0_3 = arith.constant 0 : index
    %4 = vector.load %arg4[%c0_1, %c0_2, %c0_3] : memref<1x8x32xf32, #tpu.memory_space<vmem>>, vector<1x8x32xf32>
    %c0_4 = arith.constant 0 : index
    %c0_5 = arith.constant 0 : index
    %c0_6 = arith.constant 0 : index
    %5 = vector.load %arg5[%c0_4, %c0_5, %c0_6] : memref<1x8x32xf32, #tpu.memory_space<vmem>>, vector<1x8x32xf32>
    %c0_7 = arith.constant 0 : index
    %c0_8 = arith.constant 0 : index
    %c0_9 = arith.constant 0 : index
    %6 = vector.load %arg6[%c0_7, %c0_8, %c0_9] : memref<1x8x32xf32, #tpu.memory_space<vmem>>, vector<1x8x32xf32>
    %7 = vector.broadcast %3 : f32 to vector<1x8x32xf32>
    %8 = arith.mulf %4, %7 : vector<1x8x32xf32>
    "tpu.trace_start"() <{level = 10 : i32, message = "bqh,bkh->bqk"}> : () -> ()
    %cst = arith.constant dense<0.000000e+00> : vector<1x8x8xf32>
    %9 = tpu.matmul %8, %5, %cst {dimension_numbers = #tpu.dot_dimension_numbers<[2], [2], [1], [1], [0, 0, 0, 1, 1, 1], [0], [0]>} : vector<1x8x32xf32>, vector<1x8x32xf32>, vector<1x8x8xf32> -> vector<1x8x8xf32>
    "tpu.trace_stop"() : () -> ()
    %c0_10 = arith.constant 0 : index
    %c0_11 = arith.constant 0 : index
    %c0_12 = arith.constant 0 : index
    %10 = vector.load %arg9[%c0_10, %c0_11, %c0_12] : memref<1x8x1xf32, #tpu.memory_space<vmem>>, vector<1x8x1xf32>
    %cst_13 = arith.constant dense<0xFF800000> : vector<1x8xf32>
    %11 = vector.multi_reduction <maximumf>, %9, %cst_13 [2] : vector<1x8x8xf32> to vector<1x8xf32>
    %12 = vector.shape_cast %11 : vector<1x8xf32> to vector<1x8x1xf32>
    %13 = arith.maximumf %10, %12 : vector<1x8x1xf32>
    %14 = arith.subf %10, %13 : vector<1x8x1xf32>
    %15 = math.exp %14 : vector<1x8x1xf32>
    %16 = vector.broadcast %13 : vector<1x8x1xf32> to vector<1x8x8xf32>
    %17 = arith.subf %9, %16 : vector<1x8x8xf32>
    %18 = math.exp %17 : vector<1x8x8xf32>
    %c0_14 = arith.constant 0 : index
    %c0_15 = arith.constant 0 : index
    %c0_16 = arith.constant 0 : index
    %19 = vector.load %arg10[%c0_14, %c0_15, %c0_16] : memref<1x8x1xf32, #tpu.memory_space<vmem>>, vector<1x8x1xf32>
    %20 = arith.mulf %15, %19 : vector<1x8x1xf32>
    %cst_17 = arith.constant dense<0.000000e+00> : vector<1x8xf32>
    %21 = vector.multi_reduction <add>, %18, %cst_17 [2] : vector<1x8x8xf32> to vector<1x8xf32>
    %22 = vector.shape_cast %21 : vector<1x8xf32> to vector<1x8x1xf32>
    %23 = arith.addf %20, %22 : vector<1x8x1xf32>
    %c0_18 = arith.constant 0 : index
    %c0_19 = arith.constant 0 : index
    %c0_20 = arith.constant 0 : index
    %24 = vector.load %arg10[%c0_18, %c0_19, %c0_20] : memref<1x8x1xf32, #tpu.memory_space<vmem>>, vector<1x8x1xf32>
    tpu.vector_store %arg10[%c0_18, %c0_19, %c0_20], %23 {strides = array<i32>} : memref<1x8x1xf32, #tpu.memory_space<vmem>>, vector<1x8x1xf32>,
    %c0_21 = arith.constant 0 : index
    %c0_22 = arith.constant 0 : index
    %c0_23 = arith.constant 0 : index
    %25 = vector.load %arg11[%c0_21, %c0_22, %c0_23] : memref<1x8x32xf32, #tpu.memory_space<vmem>>, vector<1x8x32xf32>
    %26 = vector.broadcast %15 : vector<1x8x1xf32> to vector<1x8x32xf32>
    %27 = arith.mulf %26, %25 : vector<1x8x32xf32>
    "tpu.trace_start"() <{level = 10 : i32, message = "bqk,bkh->bqh"}> : () -> ()
    %cst_24 = arith.constant dense<0.000000e+00> : vector<1x8x32xf32>
    %28 = tpu.matmul %18, %6, %cst_24 {dimension_numbers = #tpu.dot_dimension_numbers<[2], [1], [1], [2], [0, 0, 0, 1, 1, 2], [0], [0]>} : vector<1x8x8xf32>, vector<1x8x32xf32>, vector<1x8x32xf32> -> vector<1x8x32xf32>
    "tpu.trace_stop"() : () -> ()
    %29 = arith.addf %27, %28 : vector<1x8x32xf32>
    %c0_25 = arith.constant 0 : index
    %c0_26 = arith.constant 0 : index
    %c0_27 = arith.constant 0 : index
    %30 = vector.load %arg11[%c0_25, %c0_26, %c0_27] : memref<1x8x32xf32, #tpu.memory_space<vmem>>, vector<1x8x32xf32>
    tpu.vector_store %arg11[%c0_25, %c0_26, %c0_27], %29 {strides = array<i32>} : memref<1x8x32xf32, #tpu.memory_space<vmem>>, vector<1x8x32xf32>,
    %c0_28 = arith.constant 0 : index
    %c0_29 = arith.constant 0 : index
    %c0_30 = arith.constant 0 : index
    %31 = vector.load %arg9[%c0_28, %c0_29, %c0_30] : memref<1x8x1xf32, #tpu.memory_space<vmem>>, vector<1x8x1xf32>
    tpu.vector_store %arg9[%c0_28, %c0_29, %c0_30], %13 {strides = array<i32>} : memref<1x8x1xf32, #tpu.memory_space<vmem>>, vector<1x8x1xf32>,
    %c0_i32_31 = arith.constant 0 : i32
    %32 = arith.cmpi eq, %arg2, %c0_i32_31 : i32
    %33 = arith.extui %32 : i1 to i32
    %c0_i32_32 = arith.constant 0 : i32
    %34 = arith.cmpi ne, %33, %c0_i32_32 : i32
    scf.if %34 {
      %c0_33 = arith.constant 0 : index
      %c0_34 = arith.constant 0 : index
      %c0_35 = arith.constant 0 : index
      %35 = vector.load %arg10[%c0_33, %c0_34, %c0_35] : memref<1x8x1xf32, #tpu.memory_space<vmem>>, vector<1x8x1xf32>
      %36 = tpu.reciprocal %35 : vector<1x8x1xf32> -> vector<1x8x1xf32>
      %c0_36 = arith.constant 0 : index
      %c0_37 = arith.constant 0 : index
      %c0_38 = arith.constant 0 : index
      %37 = vector.load %arg11[%c0_36, %c0_37, %c0_38] : memref<1x8x32xf32, #tpu.memory_space<vmem>>, vector<1x8x32xf32>
      %38 = vector.broadcast %36 : vector<1x8x1xf32> to vector<1x8x32xf32>
      %39 = arith.mulf %37, %38 : vector<1x8x32xf32>
      %c0_39 = arith.constant 0 : index
      %c0_40 = arith.constant 0 : index
      %c0_41 = arith.constant 0 : index
      %40 = vector.load %arg7[%c0_39, %c0_40, %c0_41] : memref<1x8x32xf32, #tpu.memory_space<vmem>>, vector<1x8x32xf32>
      tpu.vector_store %arg7[%c0_39, %c0_40, %c0_41], %39 {strides = array<i32>} : memref<1x8x32xf32, #tpu.memory_space<vmem>>, vector<1x8x32xf32>,
      %41 = vector.broadcast %36 : vector<1x8x1xf32> to vector<1x8x8xf32>
      %42 = arith.mulf %18, %41 : vector<1x8x8xf32>
      %c0_42 = arith.constant 0 : index
      %c0_43 = arith.constant 0 : index
      %c0_44 = arith.constant 0 : index
      %43 = vector.load %arg8[%c0_42, %c0_43, %c0_44] : memref<1x8x8xf32, #tpu.memory_space<vmem>>, vector<1x8x8xf32>
      tpu.vector_store %arg8[%c0_42, %c0_43, %c0_44], %42 {strides = array<i32>} : memref<1x8x8xf32, #tpu.memory_space<vmem>>, vector<1x8x8xf32>,
    } else {
    }
    return
  }
  func.func @transform_0(%arg0: i32, %arg1: i32, %arg2: i32) -> i32 {
    %c0_i32 = arith.constant 0 : i32
    %c0_i32_0 = arith.constant 0 : i32
    return %c0_i32 : i32
  }
  func.func @transform_1(%arg0: i32, %arg1: i32, %arg2: i32) -> (i32, i32, i32) {
    %c0_i32 = arith.constant 0 : i32
    %c0_i32_0 = arith.constant 0 : i32
    return %arg0, %arg1, %c0_i32 : i32, i32, i32
  }
  func.func @transform_2(%arg0: i32, %arg1: i32, %arg2: i32) -> (i32, i32, i32) {
    %c0_i32 = arith.constant 0 : i32
    %c0_i32_0 = arith.constant 0 : i32
    return %arg0, %arg2, %c0_i32 : i32, i32, i32
  }
  func.func @transform_3(%arg0: i32, %arg1: i32, %arg2: i32) -> (i32, i32, i32) {
    %c0_i32 = arith.constant 0 : i32
    %c0_i32_0 = arith.constant 0 : i32
    return %arg0, %arg2, %c0_i32 : i32, i32, i32
  }
  func.func @transform_4(%arg0: i32, %arg1: i32, %arg2: i32) -> (i32, i32, i32) {
    %c0_i32 = arith.constant 0 : i32
    %c0_i32_0 = arith.constant 0 : i32
    return %arg0, %arg1, %c0_i32 : i32, i32, i32
  }
  func.func @transform_5(%arg0: i32, %arg1: i32, %arg2: i32) -> (i32, i32, i32) {
    %c0_i32 = arith.constant 0 : i32
    %c0_i32_0 = arith.constant 0 : i32
    return %arg0, %arg1, %c0_i32 : i32, i32, i32
  }
}

</mosaic_0001>

<llo_original>
// kernel: tpu_custom_call.1
$region0: #{tpu_custom_call.1}
  #allocation0 [shape = 'u32[]', space=smem, size = 0x4, offset = 0x4, fixed_abs, tag = 'smem constant byte address 0x4 - core index']
  #allocation1 [shape = 'u32[144,128]{1,0:T(1,128)}', space=vmem, size = 0x12000, scoped, tag = 'internal scratch']
  #allocation2 [shape = 'f32[1,8,1]{2,1,0:T(8,128)}', space=vmem, size = 0x1000, scoped, tag = 'scratch operand']
  #allocation3 [shape = 'f32[1,8,1]{2,1,0:T(8,128)}', space=vmem, size = 0x1000, scoped, tag = 'scratch operand']
  #allocation4 [shape = 'f32[1,8,32]{2,1,0:T(8,128)}', space=vmem, size = 0x1000, scoped, tag = 'scratch operand']
  #allocation5 [shape = 'f32[1,1,8,1]{3,2,1,0:T(8,128)}', space=vmem, size = 0x1000, scoped, tag = 'scratch operand']
  #allocation6 [shape = 'f32[1]{0:T(128)S(6)}', space=smem, size = 0x200, scoped, tag = 'scoped memory for tpu_custom_call.1']
  %s0 = inlined_call_operand.<no memory space> [shape: f32[1], index: 0, kind: input, shape index: {}]
  %s1 = inlined_call_operand.hbm [shape: f32[2,8,32], index: 1, kind: input, shape index: {}]
  %s2 = inlined_call_operand.hbm [shape: f32[2,8,32], index: 2, kind: input, shape index: {}]
  %s3 = inlined_call_operand.hbm [shape: f32[2,8,32], index: 3, kind: input, shape index: {}]
  %s4 = inlined_call_operand.hbm [shape: f32[2,8,32], index: 4, kind: output, shape index: {0}]
  %s5 = inlined_call_operand.hbm [shape: f32[2,8,8], index: 5, kind: output, shape index: {1}]
  %6 = xla_tuple %s4, %s5
  %s7 = sld [smem:[#allocation0]]
  $region77: #{tpu_custom_call.1} parent=0
    _
  %s9 = ssub.s32 1, %s7
  %s10 = scalar_select 0, %s9, %s7
  %11 = sst [smem:[#allocation6]] %s0
  $region1: #{tpu_custom_call.1} parent=0
    #allocation7 [shape = 'u8[8192]{0}', space=vmem, size = 0x2000, scoped, tag = 'input window, operand 1']
    #allocation8 [shape = 's32[2]{0}', space=sflag, size = 0x8, scoped, tag = 'scoped memory for tpu_custom_call.1']
    #allocation9 [shape = 's32[2]{0}', space=sflag, size = 0x8, scoped, tag = 'scoped memory for tpu_custom_call.1']
    #allocation10 [shape = 'u8[8192]{0}', space=vmem, size = 0x2000, scoped, tag = 'input window, operand 2']
    #allocation11 [shape = 's32[2]{0}', space=sflag, size = 0x8, scoped, tag = 'scoped memory for tpu_custom_call.1']
    #allocation12 [shape = 'u8[8192]{0}', space=vmem, size = 0x2000, scoped, tag = 'input window, operand 3']
    #allocation13 [shape = 'u8[8192]{0}', space=vmem, size = 0x2000, scoped, tag = 'output window, operand 0']
    #allocation14 [shape = 'u8[8192]{0}', space=vmem, size = 0x2000, scoped, tag = 'output window, operand 1']
    #allocation15 [shape = 's32[2]{0}', space=sflag, size = 0x8, scoped, tag = 'scoped memory for tpu_custom_call.1']
    %12 = vsyncpa [#allocation8], 0
    %s13 = scalar_lea.sflag [#allocation8], 1
    %14 = vsyncpa %s13, 0
    %15 = vsyncpa [#allocation11], 0
    %s16 = scalar_lea.sflag [#allocation11], 1
    %17 = vsyncpa %s16, 0
    %18 = vsyncpa [#allocation9], 0
    %s19 = scalar_lea.sflag [#allocation9], 1
    %20 = vsyncpa %s19, 0
    %21 = vsyncpa [#allocation15], 0
    %s22 = scalar_lea.sflag [#allocation15], 1
    %23 = vsyncpa %s22, 0
    loop: start=0, step=1, limit=4
    $region2: #{tpu_custom_call.1} parent=1 // loop_pre_header
      _
    $region3: #{tpu_custom_call.1} parent=1 // loop_header
      %s25 = sphi 0, %s29
      %p26 = scmp.ge.s32.totalorder %s25, 4
      %s32 = sphi 0, %s51
      %s33 = sphi 0, %s47
      %s34 = sphi 0, %s43
      %s35 = sphi 0, %s32
      %s36 = sphi 0, %s33
      %s37 = sphi 0, %s34
      %s38 = sphi 0, %s35
      %s39 = sphi 0, %s36
      %s40 = sphi 0, %s37
      %s52 = sphi 0, %s52
      %s54 = sphi 0, %s52
      %s55 = sphi 0, %s54
      %s69 = sphi 0, %s55
      %s77 = sphi 0, %s79
      %s80 = sphi 0, %s77
      %s81 = sphi 0, %s80
      %s97 = sphi 0, %s81
      %s105 = sphi 0, %s107
      %s108 = sphi 0, %s105
      %s109 = sphi 0, %s108
      %s125 = sphi 0, %s109
      %s133 = sphi 0, %s135
      %s136 = sphi 0, %s133
      %s137 = sphi 0, %s136
      %s153 = sphi 0, %s137
      %s161 = sphi 0, %s163
      %s164 = sphi 0, %s161
      %s165 = sphi 0, %s164
      %s181 = sphi 0, %s165
      %s189 = sphi 0, %s191
      %s192 = sphi 0, %s189
      %s193 = sphi 0, %s192
      %s209 = sphi 0, %s193
    $region4: #{tpu_custom_call.1} parent=1 // loop_header_branch
      %28 = sbr.rel (%p26) target = $region8
    $region5: #{tpu_custom_call.1} parent=1 // loop_body
      %s30 = ssub.s32 %s25, 1
      %s31 = ssub.s32 %s25, 2
      %s41 = sadd.s32 1, %s34
      %p42 = scmp.ge.s32.totalorder %s41, 1
      %s43 = scalar_select %p42, 0, %s41
      %s44 = sadd.s32 1, %s33
      %s45 = scalar_select %p42, %s44, %s33
      %p46 = scmp.ge.s32.totalorder %s45, 1
      %s47 = scalar_select %p46, 0, %s45
      %s48 = sadd.s32 1, %s32
      %s49 = scalar_select %p46, %s48, %s32
      %p50 = scmp.ge.s32.totalorder %s49, 2
      %s51 = scalar_select %p50, 0, %s49
      %s53 = sadd.s32 %s52, 1
      %p56 = scmp.eq.s32.totalorder %s25, 1
      %p57 = scmp.ne.s32.totalorder %s52, %s54
      %p58 = scmp.eq.s32.totalorder %s25, 0
      %p59 = por %p57, %p58
      %p60 = scmp.ne.s32.totalorder %s52, %s54
      %p61 = scmp.eq.s32.totalorder %s30, 1
      %p62 = por %p60, %p61
      %p63 = scmp.ne.s32.totalorder %s54, %s55
      %p64 = scmp.eq.s32.totalorder %s30, 0
      %p65 = por %p63, %p64
      %p66 = scmp.ne.s32.totalorder %s54, %s55
      %p67 = scmp.eq.s32.totalorder %s31, 1
      %p68 = por %p66, %p67
      %p70 = scmp.ne.s32.totalorder %s55, %s69
      %p71 = scmp.eq.s32.totalorder %s31, 0
      %p72 = por %p70, %p71
      %s73 = ssub.s32 %s32, %s51
      %s74 = ssub.s32 %s33, %s47
      %s75 = sor.u32 %s73, %s74
      %p76 = scmp.eq.s32.totalorder %s75, 0
      %s78 = sadd.s32 %s77, 1
      %s79 = scalar_select %p76, %s77, %s78
      %p82 = pneg %p76
      %p83 = scmp.eq.s32.totalorder %s25, 1
      %p84 = por %p82, %p83
      %p85 = scmp.ne.s32.totalorder %s77, %s80
      %p86 = scmp.eq.s32.totalorder %s25, 0
      %p87 = por %p85, %p86
      %p88 = scmp.ne.s32.totalorder %s77, %s80
      %p89 = scmp.eq.s32.totalorder %s30, 1
      %p90 = por %p88, %p89
      %p91 = scmp.ne.s32.totalorder %s80, %s81
      %p92 = scmp.eq.s32.totalorder %s30, 0
      %p93 = por %p91, %p92
      %p94 = scmp.ne.s32.totalorder %s80, %s81
      %p95 = scmp.eq.s32.totalorder %s31, 1
      %p96 = por %p94, %p95
      %p98 = scmp.ne.s32.totalorder %s81, %s97
      %p99 = scmp.eq.s32.totalorder %s31, 0
      %p100 = por %p98, %p99
      %s101 = ssub.s32 %s32, %s51
      %s102 = ssub.s32 %s34, %s43
      %s103 = sor.u32 %s101, %s102
      %p104 = scmp.eq.s32.totalorder %s103, 0
      %s106 = sadd.s32 %s105, 1
      %s107 = scalar_select %p104, %s105, %s106
      %p110 = pneg %p104
      %p111 = scmp.eq.s32.totalorder %s25, 1
      %p112 = por %p110, %p111
      %p113 = scmp.ne.s32.totalorder %s105, %s108
      %p114 = scmp.eq.s32.totalorder %s25, 0
      %p115 = por %p113, %p114
      %p116 = scmp.ne.s32.totalorder %s105, %s108
      %p117 = scmp.eq.s32.totalorder %s30, 1
      %p118 = por %p116, %p117
      %p119 = scmp.ne.s32.totalorder %s108, %s109
      %p120 = scmp.eq.s32.totalorder %s30, 0
      %p121 = por %p119, %p120
      %p122 = scmp.ne.s32.totalorder %s108, %s109
      %p123 = scmp.eq.s32.totalorder %s31, 1
      %p124 = por %p122, %p123
      %p126 = scmp.ne.s32.totalorder %s109, %s125
      %p127 = scmp.eq.s32.totalorder %s31, 0
      %p128 = por %p126, %p127
      %s129 = ssub.s32 %s32, %s51
      %s130 = ssub.s32 %s34, %s43
      %s131 = sor.u32 %s129, %s130
      %p132 = scmp.eq.s32.totalorder %s131, 0
      %s134 = sadd.s32 %s133, 1
      %s135 = scalar_select %p132, %s133, %s134
      %p138 = pneg %p132
      %p139 = scmp.eq.s32.totalorder %s25, 1
      %p140 = por %p138, %p139
      %p141 = scmp.ne.s32.totalorder %s133, %s136
      %p142 = scmp.eq.s32.totalorder %s25, 0
      %p143 = por %p141, %p142
      %p144 = scmp.ne.s32.totalorder %s133, %s136
      %p145 = scmp.eq.s32.totalorder %s30, 1
      %p146 = por %p144, %p145
      %p147 = scmp.ne.s32.totalorder %s136, %s137
      %p148 = scmp.eq.s32.totalorder %s30, 0
      %p149 = por %p147, %p148
      %p150 = scmp.ne.s32.totalorder %s136, %s137
      %p151 = scmp.eq.s32.totalorder %s31, 1
      %p152 = por %p150, %p151
      %p154 = scmp.ne.s32.totalorder %s137, %s153
      %p155 = scmp.eq.s32.totalorder %s31, 0
      %p156 = por %p154, %p155
      %s157 = ssub.s32 %s32, %s51
      %s158 = ssub.s32 %s33, %s47
      %s159 = sor.u32 %s157, %s158
      %p160 = scmp.eq.s32.totalorder %s159, 0
      %s162 = sadd.s32 %s161, 1
      %s163 = scalar_select %p160, %s161, %s162
      %p166 = pneg %p160
      %p167 = scmp.eq.s32.totalorder %s25, 1
      %p168 = por %p166, %p167
      %p169 = scmp.ne.s32.totalorder %s161, %s164
      %p170 = scmp.eq.s32.totalorder %s25, 0
      %p171 = por %p169, %p170
      %p172 = scmp.ne.s32.totalorder %s161, %s164
      %p173 = scmp.eq.s32.totalorder %s30, 1
      %p174 = por %p172, %p173
      %p175 = scmp.ne.s32.totalorder %s164, %s165
      %p176 = scmp.eq.s32.totalorder %s30, 0
      %p177 = por %p175, %p176
      %p178 = scmp.ne.s32.totalorder %s164, %s165
      %p179 = scmp.eq.s32.totalorder %s31, 1
      %p180 = por %p178, %p179
      %p182 = scmp.ne.s32.totalorder %s165, %s181
      %p183 = scmp.eq.s32.totalorder %s31, 0
      %p184 = por %p182, %p183
      %s185 = ssub.s32 %s32, %s51
      %s186 = ssub.s32 %s33, %s47
      %s187 = sor.u32 %s185, %s186
      %p188 = scmp.eq.s32.totalorder %s187, 0
      %s190 = sadd.s32 %s189, 1
      %s191 = scalar_select %p188, %s189, %s190
      %p194 = pneg %p188
      %p195 = scmp.eq.s32.totalorder %s25, 1
      %p196 = por %p194, %p195
      %p197 = scmp.ne.s32.totalorder %s189, %s192
      %p198 = scmp.eq.s32.totalorder %s25, 0
      %p199 = por %p197, %p198
      %p200 = scmp.ne.s32.totalorder %s189, %s192
      %p201 = scmp.eq.s32.totalorder %s30, 1
      %p202 = por %p200, %p201
      %p203 = scmp.ne.s32.totalorder %s192, %s193
      %p204 = scmp.eq.s32.totalorder %s30, 0
      %p205 = por %p203, %p204
      %p206 = scmp.ne.s32.totalorder %s192, %s193
      %p207 = scmp.eq.s32.totalorder %s31, 1
      %p208 = por %p206, %p207
      %p210 = scmp.ne.s32.totalorder %s193, %s209
      %p211 = scmp.eq.s32.totalorder %s31, 0
      %p212 = por %p210, %p211
      %p213 = scmp.le.s32.totalorder 1, %s25
      %p214 = scmp.lt.s32.totalorder %s25, 3
      %p215 = pnand %p213, %p214
      %p216 = pneg %p215
      // Predicated region
      $region9: #{tpu_custom_call.1} parent=5 // pred_check
        _
      $region10: #{tpu_custom_call.1} parent=5 // pred_check_branch
        %218 = sbr.rel (%p215) target = $region12
      $region11: #{tpu_custom_call.1} parent=5 // pred_region
        %s219 = ssub.s32 %s25, 1
        // Predicated region
        $region13: #{tpu_custom_call.1} parent=11 // pred_check
          %p220 = pneg %p65
        $region14: #{tpu_custom_call.1} parent=11 // pred_check_branch
          %222 = sbr.rel (%p220) target = $region16
        $region15: #{tpu_custom_call.1} parent=11 // pred_region
          _
        $region16: #{tpu_custom_call.1} parent=11 // pred_fallthru
          _
      $region12: #{tpu_custom_call.1} parent=5 // pred_fallthru
        _
      %p223 = scmp.lt.s32.totalorder %s25, 2
      // Predicated region
      $region17: #{tpu_custom_call.1} parent=5 // pred_check
        %p224 = pneg %p223
      $region18: #{tpu_custom_call.1} parent=5 // pred_check_branch
        %226 = sbr.rel (%p224) target = $region20
      $region19: #{tpu_custom_call.1} parent=5 // pred_region
        // Predicated region
        $region21: #{tpu_custom_call.1} parent=19 // pred_check
          %p227 = pneg %p87
        $region22: #{tpu_custom_call.1} parent=19 // pred_check_branch
          %229 = sbr.rel (%p227) target = $region24
        $region23: #{tpu_custom_call.1} parent=19 // pred_region
          %s230 = sand.u32 %s77, 1
          %s231 = scalar_lea.sflag [#allocation8], %s230
          %s232 = sand.u32 %s77, 1
          %s233 = smul.addr %s232, 8
          %s234 = scalar_lea.vmem [#allocation7], %s233
          %s236 = ssub.s32 128, 128
          %237 = vsyncadd %s231, %s236
          %s238 = sadd.s32 %s33, %s32
          %s239 = smul.addr %s238, 128
          %s240 = scalar_lea.hbm %s1, %s239
          %s242 = sshll.u32 %s234, 4
          %s243 = int_to_ptr.vmem [resolvable:$true] %s242
          %245 = dma.hbm_to_vmem [thread:$0]  %s240, 128, %s243, %s231
        $region24: #{tpu_custom_call.1} parent=19 // pred_fallthru
          _
        // Predicated region
        $region25: #{tpu_custom_call.1} parent=19 // pred_check
          %p246 = pneg %p115
        $region26: #{tpu_custom_call.1} parent=19 // pred_check_branch
          %248 = sbr.rel (%p246) target = $region28
        $region27: #{tpu_custom_call.1} parent=19 // pred_region
          %s249 = sand.u32 %s25, 1
          %s250 = scalar_lea.sflag [#allocation11], %s249
          %s251 = sand.u32 %s105, 1
          %s252 = smul.addr %s251, 8
          %s253 = scalar_lea.vmem [#allocation10], %s252
          %s255 = ssub.s32 128, 128
          %256 = vsyncadd %s250, %s255
          %s257 = sadd.s32 %s34, %s32
          %s258 = smul.addr %s257, 128
          %s259 = scalar_lea.hbm %s2, %s258
          %s261 = sshll.u32 %s253, 4
          %s262 = int_to_ptr.vmem [resolvable:$true] %s261
          %264 = dma.hbm_to_vmem [thread:$0]  %s259, 128, %s262, %s250
        $region28: #{tpu_custom_call.1} parent=19 // pred_fallthru
          _
        // Predicated region
        $region29: #{tpu_custom_call.1} parent=19 // pred_check
          %p265 = pneg %p143
        $region30: #{tpu_custom_call.1} parent=19 // pred_check_branch
          %267 = sbr.rel (%p265) target = $region32
        $region31: #{tpu_custom_call.1} parent=19 // pred_region
          %s268 = sand.u32 %s25, 1
          %s269 = scalar_lea.sflag [#allocation11], %s268
          %s270 = sand.u32 %s133, 1
          %s271 = smul.addr %s270, 8
          %s272 = scalar_lea.vmem [#allocation12], %s271
          %s274 = ssub.s32 128, 128
          %275 = vsyncadd %s269, %s274
          %s276 = sadd.s32 %s34, %s32
          %s277 = smul.addr %s276, 128
          %s278 = scalar_lea.hbm %s3, %s277
          %s280 = sshll.u32 %s272, 4
          %s281 = int_to_ptr.vmem [resolvable:$true] %s280
          %283 = dma.hbm_to_vmem [thread:$0]  %s278, 128, %s281, %s269
        $region32: #{tpu_custom_call.1} parent=19 // pred_fallthru
          _
      $region20: #{tpu_custom_call.1} parent=5 // pred_fallthru
        _
      %p284 = scmp.le.s32.totalorder 1, %s25
      %p285 = scmp.lt.s32.totalorder %s25, 3
      %p286 = pnand %p284, %p285
      %p287 = pneg %p286
      // Predicated region
      $region33: #{tpu_custom_call.1} parent=5 // pred_check
        _
      $region34: #{tpu_custom_call.1} parent=5 // pred_check_branch
        %289 = sbr.rel (%p286) target = $region36
      $region35: #{tpu_custom_call.1} parent=5 // pred_region
        %s290 = ssub.s32 %s25, 1
        %s291 = sand.u32 %s80, 1
        %s292 = scalar_lea.sflag [#allocation8], %s291
        %s293 = sand.u32 %s80, 1
        %s294 = smul.addr %s293, 8
        %s295 = scalar_lea.vmem [#allocation7], %s294
        // Predicated region
        $region37: #{tpu_custom_call.1} parent=35 // pred_check
          %p296 = pneg %p93
        $region38: #{tpu_custom_call.1} parent=35 // pred_check_branch
          %298 = sbr.rel (%p296) target = $region40
        $region39: #{tpu_custom_call.1} parent=35 // pred_region
          %299 = dma.done %s292, 128
        $region40: #{tpu_custom_call.1} parent=35 // pred_fallthru
          _
        %s300 = sand.u32 %s30, 1
        %s301 = scalar_lea.sflag [#allocation11], %s300
        %s302 = sand.u32 %s108, 1
        %s303 = smul.addr %s302, 8
        %s304 = scalar_lea.vmem [#allocation10], %s303
        // Predicated region
        $region41: #{tpu_custom_call.1} parent=35 // pred_check
          %p305 = pneg %p121
        $region42: #{tpu_custom_call.1} parent=35 // pred_check_branch
          %307 = sbr.rel (%p305) target = $region44
        $region43: #{tpu_custom_call.1} parent=35 // pred_region
          %308 = dma.done %s301, 128
        $region44: #{tpu_custom_call.1} parent=35 // pred_fallthru
          _
        %s309 = sand.u32 %s30, 1
        %s310 = scalar_lea.sflag [#allocation11], %s309
        %s311 = sand.u32 %s136, 1
        %s312 = smul.addr %s311, 8
        %s313 = scalar_lea.vmem [#allocation12], %s312
        // Predicated region
        $region45: #{tpu_custom_call.1} parent=35 // pred_check
          %p314 = pneg %p149
        $region46: #{tpu_custom_call.1} parent=35 // pred_check_branch
          %316 = sbr.rel (%p314) target = $region48
        $region47: #{tpu_custom_call.1} parent=35 // pred_region
          %317 = dma.done %s310, 128
        $region48: #{tpu_custom_call.1} parent=35 // pred_fallthru
          _
        %p318 = pneg %p65
        %p319 = pneg %p62
        %s320 = sand.u32 %s80, 1
        %s321 = scalar_lea.sflag [#allocation8], %s320
        %s322 = sand.u32 %s80, 1
        %s323 = smul.addr %s322, 8
        %s324 = scalar_lea.vmem [#allocation7], %s323
        %p325 = pneg %p93
        %p326 = pneg %p90
        %s327 = sand.u32 %s30, 1
        %s328 = scalar_lea.sflag [#allocation11], %s327
        %s329 = sand.u32 %s108, 1
        %s330 = smul.addr %s329, 8
        %s331 = scalar_lea.vmem [#allocation10], %s330
        %p332 = pneg %p121
        %p333 = pneg %p118
        %s334 = sand.u32 %s30, 1
        %s335 = scalar_lea.sflag [#allocation11], %s334
        %s336 = sand.u32 %s136, 1
        %s337 = smul.addr %s336, 8
        %s338 = scalar_lea.vmem [#allocation12], %s337
        %p339 = pneg %p149
        %p340 = pneg %p146
        %p341 = pneg %p177
        %p342 = pneg %p174
        %s343 = sand.u32 %s164, 1
        %s344 = scalar_lea.sflag [#allocation9], %s343
        %s345 = sand.u32 %s164, 1
        %s346 = smul.addr %s345, 8
        %s347 = scalar_lea.vmem [#allocation13], %s346
        %p348 = pneg %p205
        %p349 = pneg %p202
        %s350 = sand.u32 %s192, 1
        %s351 = scalar_lea.sflag [#allocation15], %s350
        %s352 = sand.u32 %s192, 1
        %s353 = smul.addr %s352, 8
        %s354 = scalar_lea.vmem [#allocation14], %s353
        %p355 = scmp.eq.s32.totalorder %s37, 0
        // Predicated region
        $region49: #{tpu_custom_call.1} parent=35 // pred_check
          %p356 = pneg %p355
        $region50: #{tpu_custom_call.1} parent=35 // pred_check_branch
          %358 = sbr.rel (%p356) target = $region52
        $region51: #{tpu_custom_call.1} parent=35 // pred_region
          %vm359 = vcmask 7168
          %360 = vst.msk [vmem:[#allocation2] sm:$0xff] %vm359, -inf
          %361 = vst.msk [vmem:[#allocation3] sm:$0xff] %vm359, 0.0
          %vm362 = vcmask 261120
          %363 = vst.msk [vmem:[#allocation4] sm:$0xff] %vm362, 0.0
        $region52: #{tpu_custom_call.1} parent=35 // pred_fallthru
          _
        %s364 = sld [smem:[#allocation6]]
        %v365 = vld [vmem:[%s295] sm:$0xff]
        %v366 = vld [vmem:[%s304] sm:$0xff]
        %v367 = vld [vmem:[%s313] sm:$0xff]
        %v368 = vstv %s364
        %v369 = vmul.f32 %v365, %v368
        %vm370 = vcmask 261120
        %v372 = vsel %vm370, %v369, 0
        %v375 = vsel %vm370, %v366, 0
        %377 = vmatprep.subr.mxu0 0.0
        %378 = vmatpush1.xpose.msra.mxu0 %v375
        %379 = vmatprep.subr.mxu0 0.0
        %380 = vmatpush1.xpose.msra.mxu0 0.0
        %381 = vmatprep.subr.mxu0 0.0
        %382 = vmatpush1.xpose.msra.mxu0 0.0
        %383 = vmatprep.subr.mxu0 0.0
        %384 = vmatpush1.xpose.msra.mxu0 0.0
        %385 = vmatprep.subr.mxu0 0.0
        %386 = vmatpush1.xpose.msra.mxu0 0.0
        %387 = vmatprep.subr.mxu0 0.0
        %388 = vmatpush1.xpose.msra.mxu0 0.0
        %389 = vmatprep.subr.mxu0 0.0
        %390 = vmatpush1.xpose.msra.mxu0 0.0
        %391 = vmatprep.subr.mxu0 0.0
        %392 = vmatpush1.xpose.msra.mxu0 0.0
        %393 = vmatprep.subr.mxu0 0.0
        %394 = vmatpush1.xpose.msra.mxu0 0.0
        %395 = vmatprep.subr.mxu0 0.0
        %396 = vmatpush1.xpose.msra.mxu0 0.0
        %397 = vmatprep.subr.mxu0 0.0
        %398 = vmatpush1.xpose.msra.mxu0 0.0
        %399 = vmatprep.subr.mxu0 0.0
        %400 = vmatpush1.xpose.msra.mxu0 0.0
        %401 = vmatprep.subr.mxu0 0.0
        %402 = vmatpush1.xpose.msra.mxu0 0.0
        %403 = vmatprep.subr.mxu0 0.0
        %404 = vmatpush1.xpose.msra.mxu0 0.0
        %405 = vmatprep.subr.mxu0 0.0
        %406 = vmatpush1.xpose.msra.mxu0 0.0
        %407 = vmatprep.subr.mxu0 0.0
        %408 = vmatpush1.xpose.msra.mxu0 0.0
        %409 = vmatprep.subr.mxu0 0.0
        %410 = vmatpush1.xpose.msra.mxu0 0.0
        %411 = vmatprep.subr.mxu0 0.0
        %412 = vmatpush1.xpose.msra.mxu0 0.0
        %413 = vmatprep.subr.mxu0 0.0
        %414 = vmatpush1.xpose.msra.mxu0 0.0
        %415 = vmatprep.subr.mxu0 0.0
        %416 = vmatpush1.xpose.msra.mxu0 0.0
        %417 = vmatprep.subr.mxu0 0.0
        %418 = vmatpush1.xpose.msra.mxu0 0.0
        %419 = vmatprep.subr.mxu0 0.0
        %420 = vmatpush1.xpose.msra.mxu0 0.0
        %421 = vmatprep.subr.mxu0 0.0
        %422 = vmatpush1.xpose.msra.mxu0 0.0
        %423 = vmatprep.subr.mxu0 0.0
        %424 = vmatpush1.xpose.msra.mxu0 0.0
        %425 = vmatprep.subr.mxu0 0.0
        %426 = vmatpush1.xpose.msra.mxu0 0.0
        %427 = vmatprep.subr.mxu0 0.0
        %428 = vmatpush1.xpose.msra.mxu0 0.0
        %429 = vmatprep.subr.mxu0 0.0
        %430 = vmatpush1.xpose.msra.mxu0 0.0
        %431 = vmatprep.subr.mxu0 0.0
        %432 = vmatpush1.xpose.msra.mxu0 0.0
        %433 = vmatprep.subr.mxu0 0.0
        %434 = vmatpush1.xpose.msra.mxu0 0.0
        %435 = vmatprep.subr.mxu0 0.0
        %436 = vmatpush1.xpose.msra.mxu0 0.0
        %437 = vmatprep.subr.mxu0 0.0
        %438 = vmatpush1.xpose.msra.mxu0 0.0
        %439 = vmatprep.subr.mxu0 0.0
        %440 = vmatpush1.xpose.msra.mxu0 0.0
        %441 = vmatprep.mubr.f32.mxu0 0.0
        %442 = vmatmul.mubr.f32.gmra.mrb[0].mxu0 %v372
        %v443 = vpop.f32.mrb[0].mxu0
        %v444 = vadd.f32 0.0, %v443
        %v445 = vpop.f32.mrb[0].mxu0
        %446 = vdwg.mxu0
        %v447 = vld [vmem:[#allocation2] sm:$0xff]
        %vm448 = vcmask 64512
        %v449 = vsel %vm448, %v444, -inf
        %450 = vmax.xlane.f32.xlu0 %v449
        %v451 = vpop.xlane.xlu0 %450
        %v452 = vmax.f32 %v447, %v451
        %v453 = vsub.f32 %v447, %v452
        %v454 = vmul.f32 %v453, 1.442695
        %v455 = vpow.pop %v454
        %457 = vset.pattern.permute.xlu0 0
        %458 = vperm.xlu0 %457, %v452
        %v459 = vpop.permute.xlu0 %458
        %v461 = vsub.f32 %v444, %v459
        %v462 = vmul.f32 %v461, 1.442695
        %v463 = vpow.pop %v462
        %v464 = vld [vmem:[#allocation3] sm:$0xff]
        %v465 = vmul.f32 %v455, %v464
        %v466 = vsel %vm448, %v463, 0.0
        %467 = vadd.xlane.f32.xlu0 %v466
        %v468 = vpop.xlane.xlu0 %467
        %v469 = vadd.f32 %v465, %v468
        %vm470 = vcmask 7168
        %471 = vst.msk [vmem:[#allocation3] sm:$0xff] %vm470, %v469
        %v472 = vld [vmem:[#allocation4] sm:$0xff]
        %474 = vset.pattern.permute.xlu0 0
        %475 = vperm.xlu0 %474, %v455
        %v476 = vpop.permute.xlu0 %475
        %v478 = vmul.f32 %v476, %v472
        %v480 = vsel %vm448, %v463, 0
        %482 = vmatprep.subr.mxu0 0.0
        %483 = vmatpush1.msra.mxu0 %v367
        %484 = vmatprep.subr.mxu0 0.0
        %485 = vmatpush1.msra.mxu0 0.0
        %486 = vmatprep.subr.mxu0 0.0
        %487 = vmatpush1.msra.mxu0 0.0
        %488 = vmatprep.subr.mxu0 0.0
        %489 = vmatpush1.msra.mxu0 0.0
        %490 = vmatprep.subr.mxu0 0.0
        %491 = vmatpush1.msra.mxu0 0.0
        %492 = vmatprep.subr.mxu0 0.0
        %493 = vmatpush1.msra.mxu0 0.0
        %494 = vmatprep.subr.mxu0 0.0
        %495 = vmatpush1.msra.mxu0 0.0
        %496 = vmatprep.subr.mxu0 0.0
        %497 = vmatpush1.msra.mxu0 0.0
        %498 = vmatprep.subr.mxu0 0.0
        %499 = vmatpush1.msra.mxu0 0.0
        %500 = vmatprep.subr.mxu0 0.0
        %501 = vmatpush1.msra.mxu0 0.0
        %502 = vmatprep.subr.mxu0 0.0
        %503 = vmatpush1.msra.mxu0 0.0
        %504 = vmatprep.subr.mxu0 0.0
        %505 = vmatpush1.msra.mxu0 0.0
        %506 = vmatprep.subr.mxu0 0.0
        %507 = vmatpush1.msra.mxu0 0.0
        %508 = vmatprep.subr.mxu0 0.0
        %509 = vmatpush1.msra.mxu0 0.0
        %510 = vmatprep.subr.mxu0 0.0
        %511 = vmatpush1.msra.mxu0 0.0
        %512 = vmatprep.subr.mxu0 0.0
        %513 = vmatpush1.msra.mxu0 0.0
        %514 = vmatprep.subr.mxu0 0.0
        %515 = vmatpush1.msra.mxu0 0.0
        %516 = vmatprep.subr.mxu0 0.0
        %517 = vmatpush1.msra.mxu0 0.0
        %518 = vmatprep.subr.mxu0 0.0
        %519 = vmatpush1.msra.mxu0 0.0
        %520 = vmatprep.subr.mxu0 0.0
        %521 = vmatpush1.msra.mxu0 0.0
        %522 = vmatprep.subr.mxu0 0.0
        %523 = vmatpush1.msra.mxu0 0.0
        %524 = vmatprep.subr.mxu0 0.0
        %525 = vmatpush1.msra.mxu0 0.0
        %526 = vmatprep.subr.mxu0 0.0
        %527 = vmatpush1.msra.mxu0 0.0
        %528 = vmatprep.subr.mxu0 0.0
        %529 = vmatpush1.msra.mxu0 0.0
        %530 = vmatprep.subr.mxu0 0.0
        %531 = vmatpush1.msra.mxu0 0.0
        %532 = vmatprep.subr.mxu0 0.0
        %533 = vmatpush1.msra.mxu0 0.0
        %534 = vmatprep.subr.mxu0 0.0
        %535 = vmatpush1.msra.mxu0 0.0
        %536 = vmatprep.subr.mxu0 0.0
        %537 = vmatpush1.msra.mxu0 0.0
        %538 = vmatprep.subr.mxu0 0.0
        %539 = vmatpush1.msra.mxu0 0.0
        %540 = vmatprep.subr.mxu0 0.0
        %541 = vmatpush1.msra.mxu0 0.0
        %542 = vmatprep.subr.mxu0 0.0
        %543 = vmatpush1.msra.mxu0 0.0
        %544 = vmatprep.subr.mxu0 0.0
        %545 = vmatpush1.msra.mxu0 0.0
        %546 = vmatprep.mubr.f32.mxu0 0.0
        %547 = vmatmul.mubr.f32.gmra.mrb[0].mxu0 %v480
        %v548 = vpop.f32.mrb[0].mxu0
        %v549 = vadd.f32 0.0, %v548
        %v550 = vpop.f32.mrb[0].mxu0
        %551 = vdwg.mxu0
        %v552 = vadd.f32 %v478, %v549
        %553 = vst.msk [vmem:[#allocation4] sm:$0xff] %vm370, %v552
        %554 = vst.msk [vmem:[#allocation2] sm:$0xff] %vm470, %v452
        // Predicated region
        $region53: #{tpu_custom_call.1} parent=35 // pred_check
          %p555 = pneg %p355
        $region54: #{tpu_custom_call.1} parent=35 // pred_check_branch
          %557 = sbr.rel (%p555) target = $region56
        $region55: #{tpu_custom_call.1} parent=35 // pred_region
          %v558 = vld [vmem:[#allocation3] sm:$0xff]
          %v559 = vrcp.pop %v558
          %v560 = vld [vmem:[#allocation4] sm:$0xff]
          %562 = vset.pattern.permute.xlu0 0
          %563 = vperm.xlu0 %562, %v559
          %v564 = vpop.permute.xlu0 %563
          %v566 = vmul.f32 %v560, %v564
          %567 = vst.msk [vmem:[%s347] sm:$0xff] %vm370, %v566
          %v568 = vmul.f32 %v463, %v564
          %569 = vst.msk [vmem:[%s354] sm:$0xff] %vm448, %v568
        $region56: #{tpu_custom_call.1} parent=35 // pred_fallthru
          _
        %s570 = sand.u32 %s164, 1
        %s571 = scalar_lea.sflag [#allocation9], %s570
        %s572 = sand.u32 %s164, 1
        %s573 = smul.addr %s572, 8
        %s574 = scalar_lea.vmem [#allocation13], %s573
        %s575 = sand.u32 %s192, 1
        %s576 = scalar_lea.sflag [#allocation15], %s575
        %s577 = sand.u32 %s192, 1
        %s578 = smul.addr %s577, 8
        %s579 = scalar_lea.vmem [#allocation14], %s578
        // Predicated region
        $region57: #{tpu_custom_call.1} parent=35 // pred_check
          %p580 = pneg %p174
        $region58: #{tpu_custom_call.1} parent=35 // pred_check_branch
          %582 = sbr.rel (%p580) target = $region60
        $region59: #{tpu_custom_call.1} parent=35 // pred_region
          %s584 = ssub.s32 128, 128
          %585 = vsyncadd %s571, %s584
          %s586 = sadd.s32 %s36, %s35
          %s587 = smul.addr %s586, 128
          %s588 = scalar_lea.hbm %s4, %s587
          %s590 = sshll.u32 %s574, 4
          %s591 = int_to_ptr.vmem [resolvable:$true] %s590
          %593 = dma.vmem_to_hbm [thread:$0]  %s591, 128, %s588, %s571
        $region60: #{tpu_custom_call.1} parent=35 // pred_fallthru
          _
        // Predicated region
        $region61: #{tpu_custom_call.1} parent=35 // pred_check
          %p594 = pneg %p202
        $region62: #{tpu_custom_call.1} parent=35 // pred_check_branch
          %596 = sbr.rel (%p594) target = $region64
        $region63: #{tpu_custom_call.1} parent=35 // pred_region
          %s598 = ssub.s32 128, 128
          %599 = vsyncadd %s576, %s598
          %s600 = sadd.s32 %s36, %s35
          %s601 = smul.addr %s600, 128
          %s602 = scalar_lea.hbm %s5, %s601
          %s604 = sshll.u32 %s579, 4
          %s605 = int_to_ptr.vmem [resolvable:$true] %s604
          %607 = dma.vmem_to_hbm [thread:$0]  %s605, 128, %s602, %s576
        $region64: #{tpu_custom_call.1} parent=35 // pred_fallthru
          _
      $region36: #{tpu_custom_call.1} parent=5 // pred_fallthru
        _
      %p608 = scmp.le.s32.totalorder 2, %s25
      // Predicated region
      $region65: #{tpu_custom_call.1} parent=5 // pred_check
        %p609 = pneg %p608
      $region66: #{tpu_custom_call.1} parent=5 // pred_check_branch
        %611 = sbr.rel (%p609) target = $region68
      $region67: #{tpu_custom_call.1} parent=5 // pred_region
        %s612 = ssub.s32 %s25, 2
        // Predicated region
        $region69: #{tpu_custom_call.1} parent=67 // pred_check
          %p613 = pneg %p180
        $region70: #{tpu_custom_call.1} parent=67 // pred_check_branch
          %615 = sbr.rel (%p613) target = $region72
        $region71: #{tpu_custom_call.1} parent=67 // pred_region
          %s616 = sand.u32 %s165, 1
          %s617 = scalar_lea.sflag [#allocation9], %s616
          %s618 = sand.u32 %s165, 1
          %s619 = smul.addr %s618, 8
          %s620 = scalar_lea.vmem [#allocation13], %s619
          %621 = dma.done %s617, 128
        $region72: #{tpu_custom_call.1} parent=67 // pred_fallthru
          _
        // Predicated region
        $region73: #{tpu_custom_call.1} parent=67 // pred_check
          %p622 = pneg %p208
        $region74: #{tpu_custom_call.1} parent=67 // pred_check_branch
          %624 = sbr.rel (%p622) target = $region76
        $region75: #{tpu_custom_call.1} parent=67 // pred_region
          %s625 = sand.u32 %s193, 1
          %s626 = scalar_lea.sflag [#allocation15], %s625
          %s627 = sand.u32 %s193, 1
          %s628 = smul.addr %s627, 8
          %s629 = scalar_lea.vmem [#allocation14], %s628
          %630 = dma.done %s626, 128
        $region76: #{tpu_custom_call.1} parent=67 // pred_fallthru
          _
      $region68: #{tpu_custom_call.1} parent=5 // pred_fallthru
        _
    $region6: #{tpu_custom_call.1} parent=1 // loop_footer
      %s29 = sadd.s32 1, %s25
    $region7: #{tpu_custom_call.1} parent=1 // loop_footer_branch
      %24 = sbr.rel target = $region3
    $region8: #{tpu_custom_call.1} parent=1 // loop_exit
      _
    %631 = vsyncpa [#allocation8], 1
    %s632 = scalar_lea.sflag [#allocation8], 1
    %633 = vsyncpa %s632, 1
    %634 = vsyncpa [#allocation11], 1
    %s635 = scalar_lea.sflag [#allocation11], 1
    %636 = vsyncpa %s635, 1
    %637 = vsyncpa [#allocation9], 1
    %s638 = scalar_lea.sflag [#allocation9], 1
    %639 = vsyncpa %s638, 1
    %640 = vsyncpa [#allocation15], 1
    %s641 = scalar_lea.sflag [#allocation15], 1
    %642 = vsyncpa %s641, 1

</llo_original>
